<compile_context>
chip_gen: v5e
topology: v5e:2x2
jax: 0.10.0
libtpu: 0.0.40
codegen_flags: <defaults>
</compile_context>

<pallas_src>
import jax
import jax.numpy as jnp
from jax.experimental import pallas as pl
from jax.experimental.pallas import tpu as pltpu


def spatial_attention_kernel(x_ref, w1t_ref, w2t_ref, o_ref, acc_ref):
    # x_ref:   [TB, TC, HW]   input tile (batch tile, channel tile, flattened spatial)
    # w1t_ref: [HW, HID]      first Linear weight, pre-transposed
    # w2t_ref: [HID, HW]      second Linear weight, pre-transposed
    # o_ref:   [TB, HW]       per-batch spatial attention map
    # acc_ref: [TB, HW] f32   channel-sum accumulator (resident across channel axis)
    c = pl.program_id(1)

    @pl.when(c == 0)
    def _init():
        acc_ref[...] = jnp.zeros_like(acc_ref)

    # torch.sum(x, dim=1): accumulate this channel tile's contribution.
    acc_ref[...] += jnp.sum(x_ref[...].astype(jnp.float32), axis=1)

    @pl.when(c == pl.num_programs(1) - 1)
    def _finalize():
        s = acc_ref[...]                                                   # [TB, HW]
        h = jnp.dot(s, w1t_ref[...], preferred_element_type=jnp.float32)   # [TB, HID]
        h = jnp.maximum(h, 0.0)
        y = jnp.dot(h, w2t_ref[...], preferred_element_type=jnp.float32)   # [TB, HW]
        o_ref[...] = jax.nn.sigmoid(y).astype(o_ref.dtype)


def _pick_tile(n, pref):
    """Largest multiple-of-8 divisor of n that is <= pref; falls back to n (full dim)."""
    if n <= pref:
        return n
    t = (min(pref, n) // 8) * 8
    while t >= 8:
        if n % t == 0:
            return t
        t -= 8
    return n


def spatial_attention(x, w1, w2):
    """
    x:  [B, C, H, W] float32
    w1: [HW*mul, HW]  (torch nn.Linear weight layout: [out_features, in_features])
    w2: [HW, HW*mul]
    returns [B, C, H, W]: spatial attention map repeated over the channel axis.
    """
    B, C, H, W = x.shape
    HW = H * W
    hidden = w1.shape[0]
    assert w1.shape == (hidden, HW) and w2.shape == (HW, hidden)

    x_flat = x.reshape(B, C, HW)           # lane axis = HW (multiple of 128 at test shape)
    w1_t = w1.T                            # [HW, hidden]
    w2_t = w2.T                            # [hidden, HW]

    tb = _pick_tile(B, 8)                  # batch tile   -> "parallel" axis (megacore)
    tc = _pick_tile(C, 32)                 # channel tile -> "arbitrary" reduction axis
    grid = (B // tb, C // tc)

    cost = pl.CostEstimate(
        flops=2 * B * HW * hidden * 2,     # two matmuls
        transcendentals=B * HW,            # sigmoid
        bytes_accessed=(x_flat.size + w1.size + w2.size + B * HW) * 4,
    )

    y = pl.pallas_call(
        spatial_attention_kernel,
        out_shape=jax.ShapeDtypeStruct((B, HW), jnp.float32),
        grid_spec=pltpu.PrefetchScalarGridSpec(
            num_scalar_prefetch=0,
            grid=grid,
            in_specs=[
                pl.BlockSpec((tb, tc, HW), lambda b, c: (b, c, 0)),
                pl.BlockSpec((HW, hidden), lambda b, c: (0, 0)),
                pl.BlockSpec((hidden, HW), lambda b, c: (0, 0)),
            ],
            out_specs=pl.BlockSpec((tb, HW), lambda b, c: (b, 0)),
            scratch_shapes=[pltpu.VMEM((tb, HW), jnp.float32)],
        ),
        compiler_params=pltpu.CompilerParams(
            dimension_semantics=("parallel", "arbitrary"),
        ),
        cost_estimate=cost,
    )(x_flat, w1_t, w2_t)

    # out.view(B,1,H,W).repeat(1,C,1,1): broadcast OUTSIDE the kernel so the kernel
    # never writes the C-times-redundant slab; XLA fuses this into the consumer.
    return jnp.broadcast_to(y.reshape(B, 1, H, W), (B, C, H, W))


def reference(x, w1, w2):
    """Pure-JAX reference of the PyTorch forward."""
    B, C, H, W = x.shape
    s = jnp.sum(x, axis=1).reshape(B, H * W)                 # [B, HW]
    h = jnp.maximum(s @ w1.T, 0.0)                           # [B, HW*mul]
    y = jax.nn.sigmoid(h @ w2.T)                             # [B, HW]
    return jnp.broadcast_to(y.reshape(B, 1, H, W), (B, C, H, W))


if __name__ == "__main__":
    # Small shapes consistent with the module: out_length = H*W = 256, mul = 4.
    B, C, H, W = 2, 4, 16, 16
    mul = 4
    out_length = H * W
    hidden = out_length * mul

    key = jax.random.PRNGKey(0)
    kx, k1, k2 = jax.random.split(key, 3)
    x = jax.random.normal(kx, (B, C, H, W), dtype=jnp.float32)
    # torch nn.Linear weight shapes: [out_features, in_features].
    w1 = jax.random.normal(k1, (hidden, out_length), dtype=jnp.float32) * 0.02
    w2 = jax.random.normal(k2, (out_length, hidden), dtype=jnp.float32) * 0.02

    fn = jax.jit(spatial_attention)
    out = fn(x, w1, w2)
    out = jax.block_until_ready(out)

    ref = reference(x, w1, w2)
    assert out.shape == (B, C, H, W)
    assert jnp.allclose(out, ref, atol=2e-4, rtol=2e-4), "mismatch vs reference"

    print("KERNEL_OK")
</pallas_src>

<mosaic_0001>
module attributes {stable_mosaic.version = 11 : i64} {
  func.func @spatial_attention_kernel(%arg0: i32, %arg1: i32, %arg2: memref<2x4x256xf32, #tpu.memory_space<vmem>>, %arg3: memref<256x1024xf32, #tpu.memory_space<vmem>>, %arg4: memref<1024x256xf32, #tpu.memory_space<vmem>>, %arg5: memref<2x256xf32, #tpu.memory_space<vmem>>, %arg6: memref<2x256xf32, #tpu.memory_space<vmem>>) attributes {dimension_semantics = [#tpu.dimension_semantics<parallel>, #tpu.dimension_semantics<arbitrary>], iteration_bounds = array<i64: 1, 1>, scalar_prefetch = 0 : i64, scratch_operands = 1 : i64, tpu.core_type = #tpu.core_type<tc>, window_params = [{transform_indices = @transform_0, window_bounds = array<i64: 2, 4, 256>}, {pipeline_mode = #tpu.pipeline_mode<synchronous>, transform_indices = @transform_1, window_bounds = array<i64: 256, 1024>}, {pipeline_mode = #tpu.pipeline_mode<synchronous>, transform_indices = @transform_2, window_bounds = array<i64: 1024, 256>}, {transform_indices = @transform_3, window_bounds = array<i64: 2, 256>}]} {
    %c0_i32 = arith.constant 0 : i32
    %0 = arith.cmpi eq, %arg1, %c0_i32 : i32
    %1 = arith.extui %0 : i1 to i32
    %c0_i32_0 = arith.constant 0 : i32
    %2 = arith.cmpi ne, %1, %c0_i32_0 : i32
    scf.if %2 {
      %cst_9 = arith.constant 0.000000e+00 : f32
      %11 = vector.broadcast %cst_9 : f32 to vector<2x256xf32>
      %c0_10 = arith.constant 0 : index
      %c0_11 = arith.constant 0 : index
      %12 = vector.load %arg6[%c0_10, %c0_11] : memref<2x256xf32, #tpu.memory_space<vmem>>, vector<2x256xf32>
      tpu.vector_store %arg6[%c0_10, %c0_11], %11 {strides = array<i32>} : memref<2x256xf32, #tpu.memory_space<vmem>>, vector<2x256xf32>,
    } else {
    }
    %c0 = arith.constant 0 : index
    %c0_1 = arith.constant 0 : index
    %3 = vector.load %arg6[%c0, %c0_1] : memref<2x256xf32, #tpu.memory_space<vmem>>, vector<2x256xf32>
    %c0_2 = arith.constant 0 : index
    %c0_3 = arith.constant 0 : index
    %c0_4 = arith.constant 0 : index
    %4 = vector.load %arg2[%c0_2, %c0_3, %c0_4] : memref<2x4x256xf32, #tpu.memory_space<vmem>>, vector<2x4x256xf32>
    %cst = arith.constant dense<0.000000e+00> : vector<2x256xf32>
    %5 = vector.multi_reduction <add>, %4, %cst [1] : vector<2x4x256xf32> to vector<2x256xf32>
    %6 = arith.addf %3, %5 : vector<2x256xf32>
    %c0_5 = arith.constant 0 : index
    %c0_6 = arith.constant 0 : index
    %7 = vector.load %arg6[%c0_5, %c0_6] : memref<2x256xf32, #tpu.memory_space<vmem>>, vector<2x256xf32>
    tpu.vector_store %arg6[%c0_5, %c0_6], %6 {strides = array<i32>} : memref<2x256xf32, #tpu.memory_space<vmem>>, vector<2x256xf32>,
    %c0_i32_7 = arith.constant 0 : i32
    %8 = arith.cmpi eq, %arg1, %c0_i32_7 : i32
    %9 = arith.extui %8 : i1 to i32
    %c0_i32_8 = arith.constant 0 : i32
    %10 = arith.cmpi ne, %9, %c0_i32_8 : i32
    scf.if %10 {
      %c0_9 = arith.constant 0 : index
      %c0_10 = arith.constant 0 : index
      %11 = vector.load %arg6[%c0_9, %c0_10] : memref<2x256xf32, #tpu.memory_space<vmem>>, vector<2x256xf32>
      %c0_11 = arith.constant 0 : index
      %c0_12 = arith.constant 0 : index
      %12 = vector.load %arg3[%c0_11, %c0_12] : memref<256x1024xf32, #tpu.memory_space<vmem>>, vector<256x1024xf32>
      %cst_13 = arith.constant dense<0.000000e+00> : vector<2x1024xf32>
      %13 = tpu.matmul %11, %12, %cst_13 {dimension_numbers = #tpu.dot_dimension_numbers<[1], [0], [0], [1], [0, 0, 1, 1], [], []>} : vector<2x256xf32>, vector<256x1024xf32>, vector<2x1024xf32> -> vector<2x1024xf32>
      %cst_14 = arith.constant 0.000000e+00 : f32
      %14 = vector.broadcast %cst_14 : f32 to vector<2x1024xf32>
      %15 = arith.maximumf %13, %14 : vector<2x1024xf32>
      %c0_15 = arith.constant 0 : index
      %c0_16 = arith.constant 0 : index
      %16 = vector.load %arg4[%c0_15, %c0_16] : memref<1024x256xf32, #tpu.memory_space<vmem>>, vector<1024x256xf32>
      %cst_17 = arith.constant dense<0.000000e+00> : vector<2x256xf32>
      %17 = tpu.matmul %15, %16, %cst_17 {dimension_numbers = #tpu.dot_dimension_numbers<[1], [0], [0], [1], [0, 0, 1, 1], [], []>} : vector<2x1024xf32>, vector<1024x256xf32>, vector<2x256xf32> -> vector<2x256xf32>
      %18 = arith.negf %17 : vector<2x256xf32>
      %19 = math.exp %18 : vector<2x256xf32>
      %cst_18 = arith.constant 1.000000e+00 : f32
      %20 = vector.broadcast %cst_18 : f32 to vector<2x256xf32>
      %21 = arith.addf %20, %19 : vector<2x256xf32>
      %22 = arith.divf %20, %21 : vector<2x256xf32>
      %c0_19 = arith.constant 0 : index
      %c0_20 = arith.constant 0 : index
      %23 = vector.load %arg5[%c0_19, %c0_20] : memref<2x256xf32, #tpu.memory_space<vmem>>, vector<2x256xf32>
      tpu.vector_store %arg5[%c0_19, %c0_20], %22 {strides = array<i32>} : memref<2x256xf32, #tpu.memory_space<vmem>>, vector<2x256xf32>,
    } else {
    }
    return
  }
  func.func @transform_0(%arg0: i32, %arg1: i32) -> (i32, i32, i32) {
    %c0_i32 = arith.constant 0 : i32
    %c0_i32_0 = arith.constant 0 : i32
    return %arg0, %arg1, %c0_i32 : i32, i32, i32
  }
  func.func @transform_1(%arg0: i32, %arg1: i32) -> (i32, i32) {
    %c0_i32 = arith.constant 0 : i32
    %c0_i32_0 = arith.constant 0 : i32
    %c0_i32_1 = arith.constant 0 : i32
    return %c0_i32, %c0_i32_0 : i32, i32
  }
  func.func @transform_2(%arg0: i32, %arg1: i32) -> (i32, i32) {
    %c0_i32 = arith.constant 0 : i32
    %c0_i32_0 = arith.constant 0 : i32
    %c0_i32_1 = arith.constant 0 : i32
    return %c0_i32, %c0_i32_0 : i32, i32
  }
  func.func @transform_3(%arg0: i32, %arg1: i32) -> (i32, i32) {
    %c0_i32 = arith.constant 0 : i32
    %c0_i32_0 = arith.constant 0 : i32
    return %arg0, %c0_i32 : i32, i32
  }
}

</mosaic_0001>

<llo_original>
// kernel: spatial_attention.1
$region0: #{spatial_attention.1}
  #allocation0 [shape = 'u32[]', space=smem, size = 0x4, offset = 0x4, fixed_abs, tag = 'smem constant byte address 0x4 - core index']
  #allocation1 [shape = 'u32[72,128]{1,0:T(1,128)}', space=vmem, size = 0x9000, scoped, tag = 'internal scratch']
  #allocation2 [shape = 'f32[2,256]{1,0:T(2,128)}', space=vmem, size = 0x800, scoped, tag = 'scratch operand']
  %s0 = inlined_call_operand.vmem [shape: f32[2,4,256], index: 0, kind: input, shape index: {}]
  %s1 = inlined_call_operand.vmem [shape: f32[256,1024], index: 1, kind: input, shape index: {}]
  %s2 = inlined_call_operand.vmem [shape: f32[1024,256], index: 2, kind: input, shape index: {}]
  %s3 = inlined_call_operand.vmem [shape: f32[2,256], index: 3, kind: output, shape index: {}]
  %s4 = sld [smem:[#allocation0]]
  $region30: #{spatial_attention.1} parent=0
    _
  %s6 = ssub.s32 1, %s4
  %s7 = scalar_select 0, %s6, %s4
  // Predicated region
  $region2: #{spatial_attention.1} parent=0 // pred_check
    _
  $region3: #{spatial_attention.1} parent=0 // pred_check_branch
    %9 = sbr.rel (0) target = $region5
  $region4: #{spatial_attention.1} parent=0 // pred_region
    _
  $region5: #{spatial_attention.1} parent=0 // pred_fallthru
    _
  // Predicated region
  $region6: #{spatial_attention.1} parent=0 // pred_check
    _
  $region7: #{spatial_attention.1} parent=0 // pred_check_branch
    %11 = sbr.rel (0) target = $region9
  $region8: #{spatial_attention.1} parent=0 // pred_region
    _
  $region9: #{spatial_attention.1} parent=0 // pred_fallthru
    _
  // Predicated region
  $region10: #{spatial_attention.1} parent=0 // pred_check
    _
  $region11: #{spatial_attention.1} parent=0 // pred_check_branch
    %13 = sbr.rel (0) target = $region13
  $region12: #{spatial_attention.1} parent=0 // pred_region
    _
  $region13: #{spatial_attention.1} parent=0 // pred_fallthru
    _
  %p14 = scmp.eq.s32.totalorder 0, 0
  // Predicated region
  $region14: #{spatial_attention.1} parent=0 // pred_check
    %p15 = pneg %p14
  $region15: #{spatial_attention.1} parent=0 // pred_check_branch
    %17 = sbr.rel (%p15) target = $region17
  $region16: #{spatial_attention.1} parent=0 // pred_region
    %18 = vst [vmem:[#allocation2] sm:$0xf] 0.0
  $region17: #{spatial_attention.1} parent=0 // pred_fallthru
    _
  %v19 = vld [vmem:[#allocation2] sm:$0xf]
  %v20 = vld [vmem:[%s0] sm:$0xff]
  %v21 = vld [vmem:[%s0 + $0x8] sm:$0xff]
  %24 = vst [vmem:[#allocation1] ss:$2 sm:$0xff] %v20
  %v25 = vld.sshfl [vmem:[#allocation1] sm:$0xff pattern:$0x75316420]
  %v26 = vld.sshfl [vmem:[#allocation1 + $0x8] sm:$0xff pattern:$0x75316420]
  %s27 = scalar_lea.vmem [#allocation1], 16
  %28 = vst [vmem:[%s27] ss:$2 sm:$0xff] %v21
  %v29 = vld.sshfl [vmem:[#allocation1 + $0x10] sm:$0xff pattern:$0x75316420]
  %v30 = vld.sshfl [vmem:[#allocation1 + $0x18] sm:$0xff pattern:$0x75316420]
  %vm35 = vcmask 1043456
  %v36 = vsel %vm35, %v25, 0.0
  %v37 = vrot.slane %v36, 4
  %v38 = vadd.f32 %v36, %v37
  %v39 = vrot.slane %v38, 2
  %v40 = vadd.f32 %v38, %v39
  %v41 = vrot.slane %v40, 1
  %v42 = vadd.f32 %v40, %v41
  %v43 = vsel %vm35, %v26, 0.0
  %v44 = vrot.slane %v43, 4
  %v45 = vadd.f32 %v43, %v44
  %v46 = vrot.slane %v45, 2
  %v47 = vadd.f32 %v45, %v46
  %v48 = vrot.slane %v47, 1
  %v49 = vadd.f32 %v47, %v48
  %v50 = vsel %vm35, %v29, 0.0
  %v51 = vrot.slane %v50, 4
  %v52 = vadd.f32 %v50, %v51
  %v53 = vrot.slane %v52, 2
  %v54 = vadd.f32 %v52, %v53
  %v55 = vrot.slane %v54, 1
  %v56 = vadd.f32 %v54, %v55
  %v57 = vsel %vm35, %v30, 0.0
  %v58 = vrot.slane %v57, 4
  %v59 = vadd.f32 %v57, %v58
  %v60 = vrot.slane %v59, 2
  %v61 = vadd.f32 %v59, %v60
  %v62 = vrot.slane %v61, 1
  %v63 = vadd.f32 %v61, %v62
  %v68 = vrot.slane %v49, 6
  %v69 = vrot.slane %v63, 6
  %vm70 = vcmask 1041408
  %v71 = vsel %vm70, %v42, %v68
  %v72 = vsel %vm70, %v56, %v69
  %vm73 = vcmask 1044484
  %v74 = vsel %vm73, %v71, %v71
  %vm75 = vcmask 1046534
  %v76 = vsel %vm75, %v71, %v74
  %v77 = vrot.slane %v72, 7
  %vm78 = vcmask 1041409
  %v79 = vsel %vm78, %v77, %v76
  %vm80 = vcmask 1043459
  %v81 = vsel %vm80, %v77, %v79
  %vm82 = vcmask 1045509
  %v83 = vsel %vm82, %v77, %v81
  %vm84 = vcmask 1047559
  %v85 = vsel %vm84, %v77, %v83
  %v87 = vadd.f32 %v19, %v85
  %88 = vst [vmem:[#allocation2] sm:$0xf] %v87
  // Predicated region
  $region18: #{spatial_attention.1} parent=0 // pred_check
    %p89 = pneg %p14
  $region19: #{spatial_attention.1} parent=0 // pred_check_branch
    %91 = sbr.rel (%p89) target = $region21
  $region20: #{spatial_attention.1} parent=0 // pred_region
    %v92 = vld [vmem:[#allocation2] sm:$0xf]
    %v93 = vld [vmem:[%s1] sm:$0xff]
    %v94 = vld [vmem:[%s1 + $0x8] sm:$0xff]
    %v95 = vld [vmem:[%s1 + $0x10] sm:$0xff]
    %v96 = vld [vmem:[%s1 + $0x18] sm:$0xff]
    %v97 = vld [vmem:[%s1 + $0x20] sm:$0xff]
    %v98 = vld [vmem:[%s1 + $0x28] sm:$0xff]
    %v99 = vld [vmem:[%s1 + $0x30] sm:$0xff]
    %v100 = vld [vmem:[%s1 + $0x38] sm:$0xff]
    %v101 = vld [vmem:[%s1 + $0x40] sm:$0xff]
    %v102 = vld [vmem:[%s1 + $0x48] sm:$0xff]
    %v103 = vld [vmem:[%s1 + $0x50] sm:$0xff]
    %v104 = vld [vmem:[%s1 + $0x58] sm:$0xff]
    %v105 = vld [vmem:[%s1 + $0x60] sm:$0xff]
    %v106 = vld [vmem:[%s1 + $0x68] sm:$0xff]
    %v107 = vld [vmem:[%s1 + $0x70] sm:$0xff]
    %v108 = vld [vmem:[%s1 + $0x78] sm:$0xff]
    %v109 = vld [vmem:[%s1 + $0x80] sm:$0xff]
    %v110 = vld [vmem:[%s1 + $0x88] sm:$0xff]
    %v111 = vld [vmem:[%s1 + $0x90] sm:$0xff]
    %v112 = vld [vmem:[%s1 + $0x98] sm:$0xff]
    %v113 = vld [vmem:[%s1 + $0xa0] sm:$0xff]
    %v114 = vld [vmem:[%s1 + $0xa8] sm:$0xff]
    %v115 = vld [vmem:[%s1 + $0xb0] sm:$0xff]
    %v116 = vld [vmem:[%s1 + $0xb8] sm:$0xff]
    %v117 = vld [vmem:[%s1 + $0xc0] sm:$0xff]
    %v118 = vld [vmem:[%s1 + $0xc8] sm:$0xff]
    %v119 = vld [vmem:[%s1 + $0xd0] sm:$0xff]
    %v120 = vld [vmem:[%s1 + $0xd8] sm:$0xff]
    %v121 = vld [vmem:[%s1 + $0xe0] sm:$0xff]
    %v122 = vld [vmem:[%s1 + $0xe8] sm:$0xff]
    %v123 = vld [vmem:[%s1 + $0xf0] sm:$0xff]
    %v124 = vld [vmem:[%s1 + $0xf8] sm:$0xff]
    %v125 = vld [vmem:[%s1 + $0x100] sm:$0xff]
    %v126 = vld [vmem:[%s1 + $0x108] sm:$0xff]
    %v127 = vld [vmem:[%s1 + $0x110] sm:$0xff]
    %v128 = vld [vmem:[%s1 + $0x118] sm:$0xff]
    %v129 = vld [vmem:[%s1 + $0x120] sm:$0xff]
    %v130 = vld [vmem:[%s1 + $0x128] sm:$0xff]
    %v131 = vld [vmem:[%s1 + $0x130] sm:$0xff]
    %v132 = vld [vmem:[%s1 + $0x138] sm:$0xff]
    %v133 = vld [vmem:[%s1 + $0x140] sm:$0xff]
    %v134 = vld [vmem:[%s1 + $0x148] sm:$0xff]
    %v135 = vld [vmem:[%s1 + $0x150] sm:$0xff]
    %v136 = vld [vmem:[%s1 + $0x158] sm:$0xff]
    %v137 = vld [vmem:[%s1 + $0x160] sm:$0xff]
    %v138 = vld [vmem:[%s1 + $0x168] sm:$0xff]
    %v139 = vld [vmem:[%s1 + $0x170] sm:$0xff]
    %v140 = vld [vmem:[%s1 + $0x178] sm:$0xff]
    %v141 = vld [vmem:[%s1 + $0x180] sm:$0xff]
    %v142 = vld [vmem:[%s1 + $0x188] sm:$0xff]
    %v143 = vld [vmem:[%s1 + $0x190] sm:$0xff]
    %v144 = vld [vmem:[%s1 + $0x198] sm:$0xff]
    %v145 = vld [vmem:[%s1 + $0x1a0] sm:$0xff]
    %v146 = vld [vmem:[%s1 + $0x1a8] sm:$0xff]
    %v147 = vld [vmem:[%s1 + $0x1b0] sm:$0xff]
    %v148 = vld [vmem:[%s1 + $0x1b8] sm:$0xff]
    %v149 = vld [vmem:[%s1 + $0x1c0] sm:$0xff]
    %v150 = vld [vmem:[%s1 + $0x1c8] sm:$0xff]
    %v151 = vld [vmem:[%s1 + $0x1d0] sm:$0xff]
    %v152 = vld [vmem:[%s1 + $0x1d8] sm:$0xff]
    %v153 = vld [vmem:[%s1 + $0x1e0] sm:$0xff]
    %v154 = vld [vmem:[%s1 + $0x1e8] sm:$0xff]
    %v155 = vld [vmem:[%s1 + $0x1f0] sm:$0xff]
    %v156 = vld [vmem:[%s1 + $0x1f8] sm:$0xff]
    %v157 = vld [vmem:[%s1 + $0x200] sm:$0xff]
    %v158 = vld [vmem:[%s1 + $0x208] sm:$0xff]
    %v159 = vld [vmem:[%s1 + $0x210] sm:$0xff]
    %v160 = vld [vmem:[%s1 + $0x218] sm:$0xff]
    %v161 = vld [vmem:[%s1 + $0x220] sm:$0xff]
    %v162 = vld [vmem:[%s1 + $0x228] sm:$0xff]
    %v163 = vld [vmem:[%s1 + $0x230] sm:$0xff]
    %v164 = vld [vmem:[%s1 + $0x238] sm:$0xff]
    %v165 = vld [vmem:[%s1 + $0x240] sm:$0xff]
    %v166 = vld [vmem:[%s1 + $0x248] sm:$0xff]
    %v167 = vld [vmem:[%s1 + $0x250] sm:$0xff]
    %v168 = vld [vmem:[%s1 + $0x258] sm:$0xff]
    %v169 = vld [vmem:[%s1 + $0x260] sm:$0xff]
    %v170 = vld [vmem:[%s1 + $0x268] sm:$0xff]
    %v171 = vld [vmem:[%s1 + $0x270] sm:$0xff]
    %v172 = vld [vmem:[%s1 + $0x278] sm:$0xff]
    %v173 = vld [vmem:[%s1 + $0x280] sm:$0xff]
    %v174 = vld [vmem:[%s1 + $0x288] sm:$0xff]
    %v175 = vld [vmem:[%s1 + $0x290] sm:$0xff]
    %v176 = vld [vmem:[%s1 + $0x298] sm:$0xff]
    %v177 = vld [vmem:[%s1 + $0x2a0] sm:$0xff]
    %v178 = vld [vmem:[%s1 + $0x2a8] sm:$0xff]
    %v179 = vld [vmem:[%s1 + $0x2b0] sm:$0xff]
    %v180 = vld [vmem:[%s1 + $0x2b8] sm:$0xff]
    %v181 = vld [vmem:[%s1 + $0x2c0] sm:$0xff]
    %v182 = vld [vmem:[%s1 + $0x2c8] sm:$0xff]
    %v183 = vld [vmem:[%s1 + $0x2d0] sm:$0xff]
    %v184 = vld [vmem:[%s1 + $0x2d8] sm:$0xff]
    %v185 = vld [vmem:[%s1 + $0x2e0] sm:$0xff]
    %v186 = vld [vmem:[%s1 + $0x2e8] sm:$0xff]
    %v187 = vld [vmem:[%s1 + $0x2f0] sm:$0xff]
    %v188 = vld [vmem:[%s1 + $0x2f8] sm:$0xff]
    %v189 = vld [vmem:[%s1 + $0x300] sm:$0xff]
    %v190 = vld [vmem:[%s1 + $0x308] sm:$0xff]
    %v191 = vld [vmem:[%s1 + $0x310] sm:$0xff]
    %v192 = vld [vmem:[%s1 + $0x318] sm:$0xff]
    %v193 = vld [vmem:[%s1 + $0x320] sm:$0xff]
    %v194 = vld [vmem:[%s1 + $0x328] sm:$0xff]
    %v195 = vld [vmem:[%s1 + $0x330] sm:$0xff]
    %v196 = vld [vmem:[%s1 + $0x338] sm:$0xff]
    %v197 = vld [vmem:[%s1 + $0x340] sm:$0xff]
    %v198 = vld [vmem:[%s1 + $0x348] sm:$0xff]
    %v199 = vld [vmem:[%s1 + $0x350] sm:$0xff]
    %v200 = vld [vmem:[%s1 + $0x358] sm:$0xff]
    %v201 = vld [vmem:[%s1 + $0x360] sm:$0xff]
    %v202 = vld [vmem:[%s1 + $0x368] sm:$0xff]
    %v203 = vld [vmem:[%s1 + $0x370] sm:$0xff]
    %v204 = vld [vmem:[%s1 + $0x378] sm:$0xff]
    %v205 = vld [vmem:[%s1 + $0x380] sm:$0xff]
    %v206 = vld [vmem:[%s1 + $0x388] sm:$0xff]
    %v207 = vld [vmem:[%s1 + $0x390] sm:$0xff]
    %v208 = vld [vmem:[%s1 + $0x398] sm:$0xff]
    %v209 = vld [vmem:[%s1 + $0x3a0] sm:$0xff]
    %v210 = vld [vmem:[%s1 + $0x3a8] sm:$0xff]
    %v211 = vld [vmem:[%s1 + $0x3b0] sm:$0xff]
    %v212 = vld [vmem:[%s1 + $0x3b8] sm:$0xff]
    %v213 = vld [vmem:[%s1 + $0x3c0] sm:$0xff]
    %v214 = vld [vmem:[%s1 + $0x3c8] sm:$0xff]
    %v215 = vld [vmem:[%s1 + $0x3d0] sm:$0xff]
    %v216 = vld [vmem:[%s1 + $0x3d8] sm:$0xff]
    %v217 = vld [vmem:[%s1 + $0x3e0] sm:$0xff]
    %v218 = vld [vmem:[%s1 + $0x3e8] sm:$0xff]
    %v219 = vld [vmem:[%s1 + $0x3f0] sm:$0xff]
    %v220 = vld [vmem:[%s1 + $0x3f8] sm:$0xff]
    %v221 = vld [vmem:[%s1 + $0x400] sm:$0xff]
    %v222 = vld [vmem:[%s1 + $0x408] sm:$0xff]
    %v223 = vld [vmem:[%s1 + $0x410] sm:$0xff]
    %v224 = vld [vmem:[%s1 + $0x418] sm:$0xff]
    %v225 = vld [vmem:[%s1 + $0x420] sm:$0xff]
    %v226 = vld [vmem:[%s1 + $0x428] sm:$0xff]
    %v227 = vld [vmem:[%s1 + $0x430] sm:$0xff]
    %v228 = vld [vmem:[%s1 + $0x438] sm:$0xff]
    %v229 = vld [vmem:[%s1 + $0x440] sm:$0xff]
    %v230 = vld [vmem:[%s1 + $0x448] sm:$0xff]
    %v231 = vld [vmem:[%s1 + $0x450] sm:$0xff]
    %v232 = vld [vmem:[%s1 + $0x458] sm:$0xff]
    %v233 = vld [vmem:[%s1 + $0x460] sm:$0xff]
    %v234 = vld [vmem:[%s1 + $0x468] sm:$0xff]
    %v235 = vld [vmem:[%s1 + $0x470] sm:$0xff]
    %v236 = vld [vmem:[%s1 + $0x478] sm:$0xff]
    %v237 = vld [vmem:[%s1 + $0x480] sm:$0xff]
    %v238 = vld [vmem:[%s1 + $0x488] sm:$0xff]
    %v239 = vld [vmem:[%s1 + $0x490] sm:$0xff]
    %v240 = vld [vmem:[%s1 + $0x498] sm:$0xff]
    %v241 = vld [vmem:[%s1 + $0x4a0] sm:$0xff]
    %v242 = vld [vmem:[%s1 + $0x4a8] sm:$0xff]
    %v243 = vld [vmem:[%s1 + $0x4b0] sm:$0xff]
    %v244 = vld [vmem:[%s1 + $0x4b8] sm:$0xff]
    %v245 = vld [vmem:[%s1 + $0x4c0] sm:$0xff]
    %v246 = vld [vmem:[%s1 + $0x4c8] sm:$0xff]
    %v247 = vld [vmem:[%s1 + $0x4d0] sm:$0xff]
    %v248 = vld [vmem:[%s1 + $0x4d8] sm:$0xff]
    %v249 = vld [vmem:[%s1 + $0x4e0] sm:$0xff]
    %v250 = vld [vmem:[%s1 + $0x4e8] sm:$0xff]
    %v251 = vld [vmem:[%s1 + $0x4f0] sm:$0xff]
    %v252 = vld [vmem:[%s1 + $0x4f8] sm:$0xff]
    %v253 = vld [vmem:[%s1 + $0x500] sm:$0xff]
    %v254 = vld [vmem:[%s1 + $0x508] sm:$0xff]
    %v255 = vld [vmem:[%s1 + $0x510] sm:$0xff]
    %v256 = vld [vmem:[%s1 + $0x518] sm:$0xff]
    %v257 = vld [vmem:[%s1 + $0x520] sm:$0xff]
    %v258 = vld [vmem:[%s1 + $0x528] sm:$0xff]
    %v259 = vld [vmem:[%s1 + $0x530] sm:$0xff]
    %v260 = vld [vmem:[%s1 + $0x538] sm:$0xff]
    %v261 = vld [vmem:[%s1 + $0x540] sm:$0xff]
    %v262 = vld [vmem:[%s1 + $0x548] sm:$0xff]
    %v263 = vld [vmem:[%s1 + $0x550] sm:$0xff]
    %v264 = vld [vmem:[%s1 + $0x558] sm:$0xff]
    %v265 = vld [vmem:[%s1 + $0x560] sm:$0xff]
    %v266 = vld [vmem:[%s1 + $0x568] sm:$0xff]
    %v267 = vld [vmem:[%s1 + $0x570] sm:$0xff]
    %v268 = vld [vmem:[%s1 + $0x578] sm:$0xff]
    %v269 = vld [vmem:[%s1 + $0x580] sm:$0xff]
    %v270 = vld [vmem:[%s1 + $0x588] sm:$0xff]
    %v271 = vld [vmem:[%s1 + $0x590] sm:$0xff]
    %v272 = vld [vmem:[%s1 + $0x598] sm:$0xff]
    %v273 = vld [vmem:[%s1 + $0x5a0] sm:$0xff]
    %v274 = vld [vmem:[%s1 + $0x5a8] sm:$0xff]
    %v275 = vld [vmem:[%s1 + $0x5b0] sm:$0xff]
    %v276 = vld [vmem:[%s1 + $0x5b8] sm:$0xff]
    %v277 = vld [vmem:[%s1 + $0x5c0] sm:$0xff]
    %v278 = vld [vmem:[%s1 + $0x5c8] sm:$0xff]
    %v279 = vld [vmem:[%s1 + $0x5d0] sm:$0xff]
    %v280 = vld [vmem:[%s1 + $0x5d8] sm:$0xff]
    %v281 = vld [vmem:[%s1 + $0x5e0] sm:$0xff]
    %v282 = vld [vmem:[%s1 + $0x5e8] sm:$0xff]
    %v283 = vld [vmem:[%s1 + $0x5f0] sm:$0xff]
    %v284 = vld [vmem:[%s1 + $0x5f8] sm:$0xff]
    %v285 = vld [vmem:[%s1 + $0x600] sm:$0xff]
    %v286 = vld [vmem:[%s1 + $0x608] sm:$0xff]
    %v287 = vld [vmem:[%s1 + $0x610] sm:$0xff]
    %v288 = vld [vmem:[%s1 + $0x618] sm:$0xff]
    %v289 = vld [vmem:[%s1 + $0x620] sm:$0xff]
    %v290 = vld [vmem:[%s1 + $0x628] sm:$0xff]
    %v291 = vld [vmem:[%s1 + $0x630] sm:$0xff]
    %v292 = vld [vmem:[%s1 + $0x638] sm:$0xff]
    %v293 = vld [vmem:[%s1 + $0x640] sm:$0xff]
    %v294 = vld [vmem:[%s1 + $0x648] sm:$0xff]
    %v295 = vld [vmem:[%s1 + $0x650] sm:$0xff]
    %v296 = vld [vmem:[%s1 + $0x658] sm:$0xff]
    %v297 = vld [vmem:[%s1 + $0x660] sm:$0xff]
    %v298 = vld [vmem:[%s1 + $0x668] sm:$0xff]
    %v299 = vld [vmem:[%s1 + $0x670] sm:$0xff]
    %v300 = vld [vmem:[%s1 + $0x678] sm:$0xff]
    %v301 = vld [vmem:[%s1 + $0x680] sm:$0xff]
    %v302 = vld [vmem:[%s1 + $0x688] sm:$0xff]
    %v303 = vld [vmem:[%s1 + $0x690] sm:$0xff]
    %v304 = vld [vmem:[%s1 + $0x698] sm:$0xff]
    %v305 = vld [vmem:[%s1 + $0x6a0] sm:$0xff]
    %v306 = vld [vmem:[%s1 + $0x6a8] sm:$0xff]
    %v307 = vld [vmem:[%s1 + $0x6b0] sm:$0xff]
    %v308 = vld [vmem:[%s1 + $0x6b8] sm:$0xff]
    %v309 = vld [vmem:[%s1 + $0x6c0] sm:$0xff]
    %v310 = vld [vmem:[%s1 + $0x6c8] sm:$0xff]
    %v311 = vld [vmem:[%s1 + $0x6d0] sm:$0xff]
    %v312 = vld [vmem:[%s1 + $0x6d8] sm:$0xff]
    %v313 = vld [vmem:[%s1 + $0x6e0] sm:$0xff]
    %v314 = vld [vmem:[%s1 + $0x6e8] sm:$0xff]
    %v315 = vld [vmem:[%s1 + $0x6f0] sm:$0xff]
    %v316 = vld [vmem:[%s1 + $0x6f8] sm:$0xff]
    %v317 = vld [vmem:[%s1 + $0x700] sm:$0xff]
    %v318 = vld [vmem:[%s1 + $0x708] sm:$0xff]
    %v319 = vld [vmem:[%s1 + $0x710] sm:$0xff]
    %v320 = vld [vmem:[%s1 + $0x718] sm:$0xff]
    %v321 = vld [vmem:[%s1 + $0x720] sm:$0xff]
    %v322 = vld [vmem:[%s1 + $0x728] sm:$0xff]
    %v323 = vld [vmem:[%s1 + $0x730] sm:$0xff]
    %v324 = vld [vmem:[%s1 + $0x738] sm:$0xff]
    %v325 = vld [vmem:[%s1 + $0x740] sm:$0xff]
    %v326 = vld [vmem:[%s1 + $0x748] sm:$0xff]
    %v327 = vld [vmem:[%s1 + $0x750] sm:$0xff]
    %v328 = vld [vmem:[%s1 + $0x758] sm:$0xff]
    %v329 = vld [vmem:[%s1 + $0x760] sm:$0xff]
    %v330 = vld [vmem:[%s1 + $0x768] sm:$0xff]
    %v331 = vld [vmem:[%s1 + $0x770] sm:$0xff]
    %v332 = vld [vmem:[%s1 + $0x778] sm:$0xff]
    %v333 = vld [vmem:[%s1 + $0x780] sm:$0xff]
    %v334 = vld [vmem:[%s1 + $0x788] sm:$0xff]
    %v335 = vld [vmem:[%s1 + $0x790] sm:$0xff]
    %v336 = vld [vmem:[%s1 + $0x798] sm:$0xff]
    %v337 = vld [vmem:[%s1 + $0x7a0] sm:$0xff]
    %v338 = vld [vmem:[%s1 + $0x7a8] sm:$0xff]
    %v339 = vld [vmem:[%s1 + $0x7b0] sm:$0xff]
    %v340 = vld [vmem:[%s1 + $0x7b8] sm:$0xff]
    %v341 = vld [vmem:[%s1 + $0x7c0] sm:$0xff]
    %v342 = vld [vmem:[%s1 + $0x7c8] sm:$0xff]
    %v343 = vld [vmem:[%s1 + $0x7d0] sm:$0xff]
    %v344 = vld [vmem:[%s1 + $0x7d8] sm:$0xff]
    %v345 = vld [vmem:[%s1 + $0x7e0] sm:$0xff]
    %v346 = vld [vmem:[%s1 + $0x7e8] sm:$0xff]
    %v347 = vld [vmem:[%s1 + $0x7f0] sm:$0xff]
    %v348 = vld [vmem:[%s1 + $0x7f8] sm:$0xff]
    %350 = vst [vmem:[#allocation1] ss:$4 sm:$0xff] %v92
    %v351 = vld.sshfl [vmem:[#allocation1] sm:$0xff pattern:$0x73625140]
    %v352 = vld.sshfl [vmem:[#allocation1 + $0x8] sm:$0xff pattern:$0x73625140]
    %355 = vmatpush.msra.mxu0 %v213
    %356 = vmatpush.msra.mxu0 %v205
    %357 = vmatpush.msra.mxu0 %v197
    %358 = vmatpush.msra.mxu0 %v189
    %359 = vmatpush.msra.mxu0 %v181
    %360 = vmatpush.msra.mxu0 %v173
    %361 = vmatpush.msra.mxu0 %v165
    %362 = vmatpush.msra.mxu0 %v157
    %363 = vmatpush.msra.mxu0 %v149
    %364 = vmatpush.msra.mxu0 %v141
    %365 = vmatpush.msra.mxu0 %v133
    %366 = vmatpush.msra.mxu0 %v125
    %367 = vmatpush.msra.mxu0 %v117
    %368 = vmatpush.msra.mxu0 %v109
    %369 = vmatpush.msra.mxu0 %v101
    %370 = vmatpush.msra.mxu0 %v93
    %371 = vmatmul.f32.gmra.mxu0 %v351
    %v372 = vpop.f32.mrf.mxu0
    %v373 = vadd.f32 0.0, %v372
    %374 = vdwg.mxu0
    %375 = vmatpush.msra.mxu0 %v341
    %376 = vmatpush.msra.mxu0 %v333
    %377 = vmatpush.msra.mxu0 %v325
    %378 = vmatpush.msra.mxu0 %v317
    %379 = vmatpush.msra.mxu0 %v309
    %380 = vmatpush.msra.mxu0 %v301
    %381 = vmatpush.msra.mxu0 %v293
    %382 = vmatpush.msra.mxu0 %v285
    %383 = vmatpush.msra.mxu0 %v277
    %384 = vmatpush.msra.mxu0 %v269
    %385 = vmatpush.msra.mxu0 %v261
    %386 = vmatpush.msra.mxu0 %v253
    %387 = vmatpush.msra.mxu0 %v245
    %388 = vmatpush.msra.mxu0 %v237
    %389 = vmatpush.msra.mxu0 %v229
    %390 = vmatpush.msra.mxu0 %v221
    %391 = vmatmul.f32.gmra.mxu0 %v352
    %v392 = vpop.f32.mrf.mxu0
    %v393 = vadd.f32 %v373, %v392
    %394 = vdwg.mxu0
    %395 = vmatpush.msra.mxu0 %v214
    %396 = vmatpush.msra.mxu0 %v206
    %397 = vmatpush.msra.mxu0 %v198
    %398 = vmatpush.msra.mxu0 %v190
    %399 = vmatpush.msra.mxu0 %v182
    %400 = vmatpush.msra.mxu0 %v174
    %401 = vmatpush.msra.mxu0 %v166
    %402 = vmatpush.msra.mxu0 %v158
    %403 = vmatpush.msra.mxu0 %v150
    %404 = vmatpush.msra.mxu0 %v142
    %405 = vmatpush.msra.mxu0 %v134
    %406 = vmatpush.msra.mxu0 %v126
    %407 = vmatpush.msra.mxu0 %v118
    %408 = vmatpush.msra.mxu0 %v110
    %409 = vmatpush.msra.mxu0 %v102
    %410 = vmatpush.msra.mxu0 %v94
    %411 = vmatmul.f32.gmra.mxu0 %v351
    %v412 = vpop.f32.mrf.mxu0
    %v413 = vadd.f32 0.0, %v412
    %414 = vdwg.mxu0
    %415 = vmatpush.msra.mxu0 %v342
    %416 = vmatpush.msra.mxu0 %v334
    %417 = vmatpush.msra.mxu0 %v326
    %418 = vmatpush.msra.mxu0 %v318
    %419 = vmatpush.msra.mxu0 %v310
    %420 = vmatpush.msra.mxu0 %v302
    %421 = vmatpush.msra.mxu0 %v294
    %422 = vmatpush.msra.mxu0 %v286
    %423 = vmatpush.msra.mxu0 %v278
    %424 = vmatpush.msra.mxu0 %v270
    %425 = vmatpush.msra.mxu0 %v262
    %426 = vmatpush.msra.mxu0 %v254
    %427 = vmatpush.msra.mxu0 %v246
    %428 = vmatpush.msra.mxu0 %v238
    %429 = vmatpush.msra.mxu0 %v230
    %430 = vmatpush.msra.mxu0 %v222
    %431 = vmatmul.f32.gmra.mxu0 %v352
    %v432 = vpop.f32.mrf.mxu0
    %v433 = vadd.f32 %v413, %v432
    %434 = vdwg.mxu0
    %435 = vmatpush.msra.mxu0 %v215
    %436 = vmatpush.msra.mxu0 %v207
    %437 = vmatpush.msra.mxu0 %v199
    %438 = vmatpush.msra.mxu0 %v191
    %439 = vmatpush.msra.mxu0 %v183
    %440 = vmatpush.msra.mxu0 %v175
    %441 = vmatpush.msra.mxu0 %v167
    %442 = vmatpush.msra.mxu0 %v159
    %443 = vmatpush.msra.mxu0 %v151
    %444 = vmatpush.msra.mxu0 %v143
    %445 = vmatpush.msra.mxu0 %v135
    %446 = vmatpush.msra.mxu0 %v127
    %447 = vmatpush.msra.mxu0 %v119
    %448 = vmatpush.msra.mxu0 %v111
    %449 = vmatpush.msra.mxu0 %v103
    %450 = vmatpush.msra.mxu0 %v95
    %451 = vmatmul.f32.gmra.mxu0 %v351
    %v452 = vpop.f32.mrf.mxu0
    %v453 = vadd.f32 0.0, %v452
    %454 = vdwg.mxu0
    %455 = vmatpush.msra.mxu0 %v343
    %456 = vmatpush.msra.mxu0 %v335
    %457 = vmatpush.msra.mxu0 %v327
    %458 = vmatpush.msra.mxu0 %v319
    %459 = vmatpush.msra.mxu0 %v311
    %460 = vmatpush.msra.mxu0 %v303
    %461 = vmatpush.msra.mxu0 %v295
    %462 = vmatpush.msra.mxu0 %v287
    %463 = vmatpush.msra.mxu0 %v279
    %464 = vmatpush.msra.mxu0 %v271
    %465 = vmatpush.msra.mxu0 %v263
    %466 = vmatpush.msra.mxu0 %v255
    %467 = vmatpush.msra.mxu0 %v247
    %468 = vmatpush.msra.mxu0 %v239
    %469 = vmatpush.msra.mxu0 %v231
    %470 = vmatpush.msra.mxu0 %v223
    %471 = vmatmul.f32.gmra.mxu0 %v352
    %v472 = vpop.f32.mrf.mxu0
    %v473 = vadd.f32 %v453, %v472
    %474 = vdwg.mxu0
    %475 = vmatpush.msra.mxu0 %v216
    %476 = vmatpush.msra.mxu0 %v208
    %477 = vmatpush.msra.mxu0 %v200
    %478 = vmatpush.msra.mxu0 %v192
    %479 = vmatpush.msra.mxu0 %v184
    %480 = vmatpush.msra.mxu0 %v176
    %481 = vmatpush.msra.mxu0 %v168
    %482 = vmatpush.msra.mxu0 %v160
    %483 = vmatpush.msra.mxu0 %v152
    %484 = vmatpush.msra.mxu0 %v144
    %485 = vmatpush.msra.mxu0 %v136
    %486 = vmatpush.msra.mxu0 %v128
    %487 = vmatpush.msra.mxu0 %v120
    %488 = vmatpush.msra.mxu0 %v112
    %489 = vmatpush.msra.mxu0 %v104
    %490 = vmatpush.msra.mxu0 %v96
    %491 = vmatmul.f32.gmra.mxu0 %v351
    %v492 = vpop.f32.mrf.mxu0
    %v493 = vadd.f32 0.0, %v492
    %494 = vdwg.mxu0
    %495 = vmatpush.msra.mxu0 %v344
    %496 = vmatpush.msra.mxu0 %v336
    %497 = vmatpush.msra.mxu0 %v328
    %498 = vmatpush.msra.mxu0 %v320
    %499 = vmatpush.msra.mxu0 %v312
    %500 = vmatpush.msra.mxu0 %v304
    %501 = vmatpush.msra.mxu0 %v296
    %502 = vmatpush.msra.mxu0 %v288
    %503 = vmatpush.msra.mxu0 %v280
    %504 = vmatpush.msra.mxu0 %v272
    %505 = vmatpush.msra.mxu0 %v264
    %506 = vmatpush.msra.mxu0 %v256
    %507 = vmatpush.msra.mxu0 %v248
    %508 = vmatpush.msra.mxu0 %v240
    %509 = vmatpush.msra.mxu0 %v232
    %510 = vmatpush.msra.mxu0 %v224
    %511 = vmatmul.f32.gmra.mxu0 %v352
    %v512 = vpop.f32.mrf.mxu0
    %v513 = vadd.f32 %v493, %v512
    %514 = vdwg.mxu0
    %515 = vmatpush.msra.mxu0 %v217
    %516 = vmatpush.msra.mxu0 %v209
    %517 = vmatpush.msra.mxu0 %v201
    %518 = vmatpush.msra.mxu0 %v193
    %519 = vmatpush.msra.mxu0 %v185
    %520 = vmatpush.msra.mxu0 %v177
    %521 = vmatpush.msra.mxu0 %v169
    %522 = vmatpush.msra.mxu0 %v161
    %523 = vmatpush.msra.mxu0 %v153
    %524 = vmatpush.msra.mxu0 %v145
    %525 = vmatpush.msra.mxu0 %v137
    %526 = vmatpush.msra.mxu0 %v129
    %527 = vmatpush.msra.mxu0 %v121
    %528 = vmatpush.msra.mxu0 %v113
    %529 = vmatpush.msra.mxu0 %v105
    %530 = vmatpush.msra.mxu0 %v97
    %531 = vmatmul.f32.gmra.mxu0 %v351
    %v532 = vpop.f32.mrf.mxu0
    %v533 = vadd.f32 0.0, %v532
    %534 = vdwg.mxu0
    %535 = vmatpush.msra.mxu0 %v345
    %536 = vmatpush.msra.mxu0 %v337
    %537 = vmatpush.msra.mxu0 %v329
    %538 = vmatpush.msra.mxu0 %v321
    %539 = vmatpush.msra.mxu0 %v313
    %540 = vmatpush.msra.mxu0 %v305
    %541 = vmatpush.msra.mxu0 %v297
    %542 = vmatpush.msra.mxu0 %v289
    %543 = vmatpush.msra.mxu0 %v281
    %544 = vmatpush.msra.mxu0 %v273
    %545 = vmatpush.msra.mxu0 %v265
    %546 = vmatpush.msra.mxu0 %v257
    %547 = vmatpush.msra.mxu0 %v249
    %548 = vmatpush.msra.mxu0 %v241
    %549 = vmatpush.msra.mxu0 %v233
    %550 = vmatpush.msra.mxu0 %v225
    %551 = vmatmul.f32.gmra.mxu0 %v352
    %v552 = vpop.f32.mrf.mxu0
    %v553 = vadd.f32 %v533, %v552
    %554 = vdwg.mxu0
    %555 = vmatpush.msra.mxu0 %v218
    %556 = vmatpush.msra.mxu0 %v210
    %557 = vmatpush.msra.mxu0 %v202
    %558 = vmatpush.msra.mxu0 %v194
    %559 = vmatpush.msra.mxu0 %v186
    %560 = vmatpush.msra.mxu0 %v178
    %561 = vmatpush.msra.mxu0 %v170
    %562 = vmatpush.msra.mxu0 %v162
    %563 = vmatpush.msra.mxu0 %v154
    %564 = vmatpush.msra.mxu0 %v146
    %565 = vmatpush.msra.mxu0 %v138
    %566 = vmatpush.msra.mxu0 %v130
    %567 = vmatpush.msra.mxu0 %v122
    %568 = vmatpush.msra.mxu0 %v114
    %569 = vmatpush.msra.mxu0 %v106
    %570 = vmatpush.msra.mxu0 %v98
    %571 = vmatmul.f32.gmra.mxu0 %v351
    %v572 = vpop.f32.mrf.mxu0
    %v573 = vadd.f32 0.0, %v572
    %574 = vdwg.mxu0
    %575 = vmatpush.msra.mxu0 %v346
    %576 = vmatpush.msra.mxu0 %v338
    %577 = vmatpush.msra.mxu0 %v330
    %578 = vmatpush.msra.mxu0 %v322
    %579 = vmatpush.msra.mxu0 %v314
    %580 = vmatpush.msra.mxu0 %v306
    %581 = vmatpush.msra.mxu0 %v298
    %582 = vmatpush.msra.mxu0 %v290
    %583 = vmatpush.msra.mxu0 %v282
    %584 = vmatpush.msra.mxu0 %v274
    %585 = vmatpush.msra.mxu0 %v266
    %586 = vmatpush.msra.mxu0 %v258
    %587 = vmatpush.msra.mxu0 %v250
    %588 = vmatpush.msra.mxu0 %v242
    %589 = vmatpush.msra.mxu0 %v234
    %590 = vmatpush.msra.mxu0 %v226
    %591 = vmatmul.f32.gmra.mxu0 %v352
    %v592 = vpop.f32.mrf.mxu0
    %v593 = vadd.f32 %v573, %v592
    %594 = vdwg.mxu0
    %595 = vmatpush.msra.mxu0 %v219
    %596 = vmatpush.msra.mxu0 %v211
    %597 = vmatpush.msra.mxu0 %v203
    %598 = vmatpush.msra.mxu0 %v195
    %599 = vmatpush.msra.mxu0 %v187
    %600 = vmatpush.msra.mxu0 %v179
    %601 = vmatpush.msra.mxu0 %v171
    %602 = vmatpush.msra.mxu0 %v163
    %603 = vmatpush.msra.mxu0 %v155
    %604 = vmatpush.msra.mxu0 %v147
    %605 = vmatpush.msra.mxu0 %v139
    %606 = vmatpush.msra.mxu0 %v131
    %607 = vmatpush.msra.mxu0 %v123
    %608 = vmatpush.msra.mxu0 %v115
    %609 = vmatpush.msra.mxu0 %v107
    %610 = vmatpush.msra.mxu0 %v99
    %611 = vmatmul.f32.gmra.mxu0 %v351
    %v612 = vpop.f32.mrf.mxu0
    %v613 = vadd.f32 0.0, %v612
    %614 = vdwg.mxu0
    %615 = vmatpush.msra.mxu0 %v347
    %616 = vmatpush.msra.mxu0 %v339
    %617 = vmatpush.msra.mxu0 %v331
    %618 = vmatpush.msra.mxu0 %v323
    %619 = vmatpush.msra.mxu0 %v315
    %620 = vmatpush.msra.mxu0 %v307
    %621 = vmatpush.msra.mxu0 %v299
    %622 = vmatpush.msra.mxu0 %v291
    %623 = vmatpush.msra.mxu0 %v283
    %624 = vmatpush.msra.mxu0 %v275
    %625 = vmatpush.msra.mxu0 %v267
    %626 = vmatpush.msra.mxu0 %v259
    %627 = vmatpush.msra.mxu0 %v251
    %628 = vmatpush.msra.mxu0 %v243
    %629 = vmatpush.msra.mxu0 %v235
    %630 = vmatpush.msra.mxu0 %v227
    %631 = vmatmul.f32.gmra.mxu0 %v352
    %v632 = vpop.f32.mrf.mxu0
    %v633 = vadd.f32 %v613, %v632
    %634 = vdwg.mxu0
    %635 = vmatpush.msra.mxu0 %v220
    %636 = vmatpush.msra.mxu0 %v212
    %637 = vmatpush.msra.mxu0 %v204
    %638 = vmatpush.msra.mxu0 %v196
    %639 = vmatpush.msra.mxu0 %v188
    %640 = vmatpush.msra.mxu0 %v180
    %641 = vmatpush.msra.mxu0 %v172
    %642 = vmatpush.msra.mxu0 %v164
    %643 = vmatpush.msra.mxu0 %v156
    %644 = vmatpush.msra.mxu0 %v148
    %645 = vmatpush.msra.mxu0 %v140
    %646 = vmatpush.msra.mxu0 %v132
    %647 = vmatpush.msra.mxu0 %v124
    %648 = vmatpush.msra.mxu0 %v116
    %649 = vmatpush.msra.mxu0 %v108
    %650 = vmatpush.msra.mxu0 %v100
    %651 = vmatmul.f32.gmra.mxu0 %v351
    %v652 = vpop.f32.mrf.mxu0
    %v653 = vadd.f32 0.0, %v652
    %654 = vdwg.mxu0
    %655 = vmatpush.msra.mxu0 %v348
    %656 = vmatpush.msra.mxu0 %v340
    %657 = vmatpush.msra.mxu0 %v332
    %658 = vmatpush.msra.mxu0 %v324
    %659 = vmatpush.msra.mxu0 %v316
    %660 = vmatpush.msra.mxu0 %v308
    %661 = vmatpush.msra.mxu0 %v300
    %662 = vmatpush.msra.mxu0 %v292
    %663 = vmatpush.msra.mxu0 %v284
    %664 = vmatpush.msra.mxu0 %v276
    %665 = vmatpush.msra.mxu0 %v268
    %666 = vmatpush.msra.mxu0 %v260
    %667 = vmatpush.msra.mxu0 %v252
    %668 = vmatpush.msra.mxu0 %v244
    %669 = vmatpush.msra.mxu0 %v236
    %670 = vmatpush.msra.mxu0 %v228
    %671 = vmatmul.f32.gmra.mxu0 %v352
    %v672 = vpop.f32.mrf.mxu0
    %v673 = vadd.f32 %v653, %v672
    %674 = vdwg.mxu0
    %v675 = vmax.f32 %v393, 0.0
    %v676 = vmax.f32 %v433, 0.0
    %v677 = vmax.f32 %v473, 0.0
    %v678 = vmax.f32 %v513, 0.0
    %v679 = vmax.f32 %v553, 0.0
    %v680 = vmax.f32 %v593, 0.0
    %v681 = vmax.f32 %v633, 0.0
    %v682 = vmax.f32 %v673, 0.0
    %v683 = vld [vmem:[%s2] sm:$0xff]
    %v684 = vld [vmem:[%s2 + $0x8] sm:$0xff]
    %v685 = vld [vmem:[%s2 + $0x10] sm:$0xff]
    %v686 = vld [vmem:[%s2 + $0x18] sm:$0xff]
    %v687 = vld [vmem:[%s2 + $0x20] sm:$0xff]
    %v688 = vld [vmem:[%s2 + $0x28] sm:$0xff]
    %v689 = vld [vmem:[%s2 + $0x30] sm:$0xff]
    %v690 = vld [vmem:[%s2 + $0x38] sm:$0xff]
    %v691 = vld [vmem:[%s2 + $0x40] sm:$0xff]
    %v692 = vld [vmem:[%s2 + $0x48] sm:$0xff]
    %v693 = vld [vmem:[%s2 + $0x50] sm:$0xff]
    %v694 = vld [vmem:[%s2 + $0x58] sm:$0xff]
    %v695 = vld [vmem:[%s2 + $0x60] sm:$0xff]
    %v696 = vld [vmem:[%s2 + $0x68] sm:$0xff]
    %v697 = vld [vmem:[%s2 + $0x70] sm:$0xff]
    %v698 = vld [vmem:[%s2 + $0x78] sm:$0xff]
    %v699 = vld [vmem:[%s2 + $0x80] sm:$0xff]
    %v700 = vld [vmem:[%s2 + $0x88] sm:$0xff]
    %v701 = vld [vmem:[%s2 + $0x90] sm:$0xff]
    %v702 = vld [vmem:[%s2 + $0x98] sm:$0xff]
    %v703 = vld [vmem:[%s2 + $0xa0] sm:$0xff]
    %v704 = vld [vmem:[%s2 + $0xa8] sm:$0xff]
    %v705 = vld [vmem:[%s2 + $0xb0] sm:$0xff]
    %v706 = vld [vmem:[%s2 + $0xb8] sm:$0xff]
    %v707 = vld [vmem:[%s2 + $0xc0] sm:$0xff]
    %v708 = vld [vmem:[%s2 + $0xc8] sm:$0xff]
    %v709 = vld [vmem:[%s2 + $0xd0] sm:$0xff]
    %v710 = vld [vmem:[%s2 + $0xd8] sm:$0xff]
    %v711 = vld [vmem:[%s2 + $0xe0] sm:$0xff]
    %v712 = vld [vmem:[%s2 + $0xe8] sm:$0xff]
    %v713 = vld [vmem:[%s2 + $0xf0] sm:$0xff]
    %v714 = vld [vmem:[%s2 + $0xf8] sm:$0xff]
    %v715 = vld [vmem:[%s2 + $0x100] sm:$0xff]
    %v716 = vld [vmem:[%s2 + $0x108] sm:$0xff]
    %v717 = vld [vmem:[%s2 + $0x110] sm:$0xff]
    %v718 = vld [vmem:[%s2 + $0x118] sm:$0xff]
    %v719 = vld [vmem:[%s2 + $0x120] sm:$0xff]
    %v720 = vld [vmem:[%s2 + $0x128] sm:$0xff]
    %v721 = vld [vmem:[%s2 + $0x130] sm:$0xff]
    %v722 = vld [vmem:[%s2 + $0x138] sm:$0xff]
    %v723 = vld [vmem:[%s2 + $0x140] sm:$0xff]
    %v724 = vld [vmem:[%s2 + $0x148] sm:$0xff]
    %v725 = vld [vmem:[%s2 + $0x150] sm:$0xff]
    %v726 = vld [vmem:[%s2 + $0x158] sm:$0xff]
    %v727 = vld [vmem:[%s2 + $0x160] sm:$0xff]
    %v728 = vld [vmem:[%s2 + $0x168] sm:$0xff]
    %v729 = vld [vmem:[%s2 + $0x170] sm:$0xff]
    %v730 = vld [vmem:[%s2 + $0x178] sm:$0xff]
    %v731 = vld [vmem:[%s2 + $0x180] sm:$0xff]
    %v732 = vld [vmem:[%s2 + $0x188] sm:$0xff]
    %v733 = vld [vmem:[%s2 + $0x190] sm:$0xff]
    %v734 = vld [vmem:[%s2 + $0x198] sm:$0xff]
    %v735 = vld [vmem:[%s2 + $0x1a0] sm:$0xff]
    %v736 = vld [vmem:[%s2 + $0x1a8] sm:$0xff]
    %v737 = vld [vmem:[%s2 + $0x1b0] sm:$0xff]
    %v738 = vld [vmem:[%s2 + $0x1b8] sm:$0xff]
    %v739 = vld [vmem:[%s2 + $0x1c0] sm:$0xff]
    %v740 = vld [vmem:[%s2 + $0x1c8] sm:$0xff]
    %v741 = vld [vmem:[%s2 + $0x1d0] sm:$0xff]
    %v742 = vld [vmem:[%s2 + $0x1d8] sm:$0xff]
    %v743 = vld [vmem:[%s2 + $0x1e0] sm:$0xff]
    %v744 = vld [vmem:[%s2 + $0x1e8] sm:$0xff]
    %v745 = vld [vmem:[%s2 + $0x1f0] sm:$0xff]
    %v746 = vld [vmem:[%s2 + $0x1f8] sm:$0xff]
    %v747 = vld [vmem:[%s2 + $0x200] sm:$0xff]
    %v748 = vld [vmem:[%s2 + $0x208] sm:$0xff]
    %v749 = vld [vmem:[%s2 + $0x210] sm:$0xff]
    %v750 = vld [vmem:[%s2 + $0x218] sm:$0xff]
    %v751 = vld [vmem:[%s2 + $0x220] sm:$0xff]
    %v752 = vld [vmem:[%s2 + $0x228] sm:$0xff]
    %v753 = vld [vmem:[%s2 + $0x230] sm:$0xff]
    %v754 = vld [vmem:[%s2 + $0x238] sm:$0xff]
    %v755 = vld [vmem:[%s2 + $0x240] sm:$0xff]
    %v756 = vld [vmem:[%s2 + $0x248] sm:$0xff]
    %v757 = vld [vmem:[%s2 + $0x250] sm:$0xff]
    %v758 = vld [vmem:[%s2 + $0x258] sm:$0xff]
    %v759 = vld [vmem:[%s2 + $0x260] sm:$0xff]
    %v760 = vld [vmem:[%s2 + $0x268] sm:$0xff]
    %v761 = vld [vmem:[%s2 + $0x270] sm:$0xff]
    %v762 = vld [vmem:[%s2 + $0x278] sm:$0xff]
    %v763 = vld [vmem:[%s2 + $0x280] sm:$0xff]
    %v764 = vld [vmem:[%s2 + $0x288] sm:$0xff]
    %v765 = vld [vmem:[%s2 + $0x290] sm:$0xff]
    %v766 = vld [vmem:[%s2 + $0x298] sm:$0xff]
    %v767 = vld [vmem:[%s2 + $0x2a0] sm:$0xff]
    %v768 = vld [vmem:[%s2 + $0x2a8] sm:$0xff]
    %v769 = vld [vmem:[%s2 + $0x2b0] sm:$0xff]
    %v770 = vld [vmem:[%s2 + $0x2b8] sm:$0xff]
    %v771 = vld [vmem:[%s2 + $0x2c0] sm:$0xff]
    %v772 = vld [vmem:[%s2 + $0x2c8] sm:$0xff]
    %v773 = vld [vmem:[%s2 + $0x2d0] sm:$0xff]
    %v774 = vld [vmem:[%s2 + $0x2d8] sm:$0xff]
    %v775 = vld [vmem:[%s2 + $0x2e0] sm:$0xff]
    %v776 = vld [vmem:[%s2 + $0x2e8] sm:$0xff]
    %v777 = vld [vmem:[%s2 + $0x2f0] sm:$0xff]
    %v778 = vld [vmem:[%s2 + $0x2f8] sm:$0xff]
    %v779 = vld [vmem:[%s2 + $0x300] sm:$0xff]
    %v780 = vld [vmem:[%s2 + $0x308] sm:$0xff]
    %v781 = vld [vmem:[%s2 + $0x310] sm:$0xff]
    %v782 = vld [vmem:[%s2 + $0x318] sm:$0xff]
    %v783 = vld [vmem:[%s2 + $0x320] sm:$0xff]
    %v784 = vld [vmem:[%s2 + $0x328] sm:$0xff]
    %v785 = vld [vmem:[%s2 + $0x330] sm:$0xff]
    %v786 = vld [vmem:[%s2 + $0x338] sm:$0xff]
    %v787 = vld [vmem:[%s2 + $0x340] sm:$0xff]
    %v788 = vld [vmem:[%s2 + $0x348] sm:$0xff]
    %v789 = vld [vmem:[%s2 + $0x350] sm:$0xff]
    %v790 = vld [vmem:[%s2 + $0x358] sm:$0xff]
    %v791 = vld [vmem:[%s2 + $0x360] sm:$0xff]
    %v792 = vld [vmem:[%s2 + $0x368] sm:$0xff]
    %v793 = vld [vmem:[%s2 + $0x370] sm:$0xff]
    %v794 = vld [vmem:[%s2 + $0x378] sm:$0xff]
    %v795 = vld [vmem:[%s2 + $0x380] sm:$0xff]
    %v796 = vld [vmem:[%s2 + $0x388] sm:$0xff]
    %v797 = vld [vmem:[%s2 + $0x390] sm:$0xff]
    %v798 = vld [vmem:[%s2 + $0x398] sm:$0xff]
    %v799 = vld [vmem:[%s2 + $0x3a0] sm:$0xff]
    %v800 = vld [vmem:[%s2 + $0x3a8] sm:$0xff]
    %v801 = vld [vmem:[%s2 + $0x3b0] sm:$0xff]
    %v802 = vld [vmem:[%s2 + $0x3b8] sm:$0xff]
    %v803 = vld [vmem:[%s2 + $0x3c0] sm:$0xff]
    %v804 = vld [vmem:[%s2 + $0x3c8] sm:$0xff]
    %v805 = vld [vmem:[%s2 + $0x3d0] sm:$0xff]
    %v806 = vld [vmem:[%s2 + $0x3d8] sm:$0xff]
    %v807 = vld [vmem:[%s2 + $0x3e0] sm:$0xff]
    %v808 = vld [vmem:[%s2 + $0x3e8] sm:$0xff]
    %v809 = vld [vmem:[%s2 + $0x3f0] sm:$0xff]
    %v810 = vld [vmem:[%s2 + $0x3f8] sm:$0xff]
    %v811 = vld [vmem:[%s2 + $0x400] sm:$0xff]
    %v812 = vld [vmem:[%s2 + $0x408] sm:$0xff]
    %v813 = vld [vmem:[%s2 + $0x410] sm:$0xff]
    %v814 = vld [vmem:[%s2 + $0x418] sm:$0xff]
    %v815 = vld [vmem:[%s2 + $0x420] sm:$0xff]
    %v816 = vld [vmem:[%s2 + $0x428] sm:$0xff]
    %v817 = vld [vmem:[%s2 + $0x430] sm:$0xff]
    %v818 = vld [vmem:[%s2 + $0x438] sm:$0xff]
    %v819 = vld [vmem:[%s2 + $0x440] sm:$0xff]
    %v820 = vld [vmem:[%s2 + $0x448] sm:$0xff]
    %v821 = vld [vmem:[%s2 + $0x450] sm:$0xff]
    %v822 = vld [vmem:[%s2 + $0x458] sm:$0xff]
    %v823 = vld [vmem:[%s2 + $0x460] sm:$0xff]
    %v824 = vld [vmem:[%s2 + $0x468] sm:$0xff]
    %v825 = vld [vmem:[%s2 + $0x470] sm:$0xff]
    %v826 = vld [vmem:[%s2 + $0x478] sm:$0xff]
    %v827 = vld [vmem:[%s2 + $0x480] sm:$0xff]
    %v828 = vld [vmem:[%s2 + $0x488] sm:$0xff]
    %v829 = vld [vmem:[%s2 + $0x490] sm:$0xff]
    %v830 = vld [vmem:[%s2 + $0x498] sm:$0xff]
    %v831 = vld [vmem:[%s2 + $0x4a0] sm:$0xff]
    %v832 = vld [vmem:[%s2 + $0x4a8] sm:$0xff]
    %v833 = vld [vmem:[%s2 + $0x4b0] sm:$0xff]
    %v834 = vld [vmem:[%s2 + $0x4b8] sm:$0xff]
    %v835 = vld [vmem:[%s2 + $0x4c0] sm:$0xff]
    %v836 = vld [vmem:[%s2 + $0x4c8] sm:$0xff]
    %v837 = vld [vmem:[%s2 + $0x4d0] sm:$0xff]
    %v838 = vld [vmem:[%s2 + $0x4d8] sm:$0xff]
    %v839 = vld [vmem:[%s2 + $0x4e0] sm:$0xff]
    %v840 = vld [vmem:[%s2 + $0x4e8] sm:$0xff]
    %v841 = vld [vmem:[%s2 + $0x4f0] sm:$0xff]
    %v842 = vld [vmem:[%s2 + $0x4f8] sm:$0xff]
    %v843 = vld [vmem:[%s2 + $0x500] sm:$0xff]
    %v844 = vld [vmem:[%s2 + $0x508] sm:$0xff]
    %v845 = vld [vmem:[%s2 + $0x510] sm:$0xff]
    %v846 = vld [vmem:[%s2 + $0x518] sm:$0xff]
    %v847 = vld [vmem:[%s2 + $0x520] sm:$0xff]
    %v848 = vld [vmem:[%s2 + $0x528] sm:$0xff]
    %v849 = vld [vmem:[%s2 + $0x530] sm:$0xff]
    %v850 = vld [vmem:[%s2 + $0x538] sm:$0xff]
    %v851 = vld [vmem:[%s2 + $0x540] sm:$0xff]
    %v852 = vld [vmem:[%s2 + $0x548] sm:$0xff]
    %v853 = vld [vmem:[%s2 + $0x550] sm:$0xff]
    %v854 = vld [vmem:[%s2 + $0x558] sm:$0xff]
    %v855 = vld [vmem:[%s2 + $0x560] sm:$0xff]
    %v856 = vld [vmem:[%s2 + $0x568] sm:$0xff]
    %v857 = vld [vmem:[%s2 + $0x570] sm:$0xff]
    %v858 = vld [vmem:[%s2 + $0x578] sm:$0xff]
    %v859 = vld [vmem:[%s2 + $0x580] sm:$0xff]
    %v860 = vld [vmem:[%s2 + $0x588] sm:$0xff]
    %v861 = vld [vmem:[%s2 + $0x590] sm:$0xff]
    %v862 = vld [vmem:[%s2 + $0x598] sm:$0xff]
    %v863 = vld [vmem:[%s2 + $0x5a0] sm:$0xff]
    %v864 = vld [vmem:[%s2 + $0x5a8] sm:$0xff]
    %v865 = vld [vmem:[%s2 + $0x5b0] sm:$0xff]
    %v866 = vld [vmem:[%s2 + $0x5b8] sm:$0xff]
    %v867 = vld [vmem:[%s2 + $0x5c0] sm:$0xff]
    %v868 = vld [vmem:[%s2 + $0x5c8] sm:$0xff]
    %v869 = vld [vmem:[%s2 + $0x5d0] sm:$0xff]
    %v870 = vld [vmem:[%s2 + $0x5d8] sm:$0xff]
    %v871 = vld [vmem:[%s2 + $0x5e0] sm:$0xff]
    %v872 = vld [vmem:[%s2 + $0x5e8] sm:$0xff]
    %v873 = vld [vmem:[%s2 + $0x5f0] sm:$0xff]
    %v874 = vld [vmem:[%s2 + $0x5f8] sm:$0xff]
    %v875 = vld [vmem:[%s2 + $0x600] sm:$0xff]
    %v876 = vld [vmem:[%s2 + $0x608] sm:$0xff]
    %v877 = vld [vmem:[%s2 + $0x610] sm:$0xff]
    %v878 = vld [vmem:[%s2 + $0x618] sm:$0xff]
    %v879 = vld [vmem:[%s2 + $0x620] sm:$0xff]
    %v880 = vld [vmem:[%s2 + $0x628] sm:$0xff]
    %v881 = vld [vmem:[%s2 + $0x630] sm:$0xff]
    %v882 = vld [vmem:[%s2 + $0x638] sm:$0xff]
    %v883 = vld [vmem:[%s2 + $0x640] sm:$0xff]
    %v884 = vld [vmem:[%s2 + $0x648] sm:$0xff]
    %v885 = vld [vmem:[%s2 + $0x650] sm:$0xff]
    %v886 = vld [vmem:[%s2 + $0x658] sm:$0xff]
    %v887 = vld [vmem:[%s2 + $0x660] sm:$0xff]
    %v888 = vld [vmem:[%s2 + $0x668] sm:$0xff]
    %v889 = vld [vmem:[%s2 + $0x670] sm:$0xff]
    %v890 = vld [vmem:[%s2 + $0x678] sm:$0xff]
    %v891 = vld [vmem:[%s2 + $0x680] sm:$0xff]
    %v892 = vld [vmem:[%s2 + $0x688] sm:$0xff]
    %v893 = vld [vmem:[%s2 + $0x690] sm:$0xff]
    %v894 = vld [vmem:[%s2 + $0x698] sm:$0xff]
    %v895 = vld [vmem:[%s2 + $0x6a0] sm:$0xff]
    %v896 = vld [vmem:[%s2 + $0x6a8] sm:$0xff]
    %v897 = vld [vmem:[%s2 + $0x6b0] sm:$0xff]
    %v898 = vld [vmem:[%s2 + $0x6b8] sm:$0xff]
    %v899 = vld [vmem:[%s2 + $0x6c0] sm:$0xff]
    %v900 = vld [vmem:[%s2 + $0x6c8] sm:$0xff]
    %v901 = vld [vmem:[%s2 + $0x6d0] sm:$0xff]
    %v902 = vld [vmem:[%s2 + $0x6d8] sm:$0xff]
    %v903 = vld [vmem:[%s2 + $0x6e0] sm:$0xff]
    %v904 = vld [vmem:[%s2 + $0x6e8] sm:$0xff]
    %v905 = vld [vmem:[%s2 + $0x6f0] sm:$0xff]
    %v906 = vld [vmem:[%s2 + $0x6f8] sm:$0xff]
    %v907 = vld [vmem:[%s2 + $0x700] sm:$0xff]
    %v908 = vld [vmem:[%s2 + $0x708] sm:$0xff]
    %v909 = vld [vmem:[%s2 + $0x710] sm:$0xff]
    %v910 = vld [vmem:[%s2 + $0x718] sm:$0xff]
    %v911 = vld [vmem:[%s2 + $0x720] sm:$0xff]
    %v912 = vld [vmem:[%s2 + $0x728] sm:$0xff]
    %v913 = vld [vmem:[%s2 + $0x730] sm:$0xff]
    %v914 = vld [vmem:[%s2 + $0x738] sm:$0xff]
    %v915 = vld [vmem:[%s2 + $0x740] sm:$0xff]
    %v916 = vld [vmem:[%s2 + $0x748] sm:$0xff]
    %v917 = vld [vmem:[%s2 + $0x750] sm:$0xff]
    %v918 = vld [vmem:[%s2 + $0x758] sm:$0xff]
    %v919 = vld [vmem:[%s2 + $0x760] sm:$0xff]
    %v920 = vld [vmem:[%s2 + $0x768] sm:$0xff]
    %v921 = vld [vmem:[%s2 + $0x770] sm:$0xff]
    %v922 = vld [vmem:[%s2 + $0x778] sm:$0xff]
    %v923 = vld [vmem:[%s2 + $0x780] sm:$0xff]
    %v924 = vld [vmem:[%s2 + $0x788] sm:$0xff]
    %v925 = vld [vmem:[%s2 + $0x790] sm:$0xff]
    %v926 = vld [vmem:[%s2 + $0x798] sm:$0xff]
    %v927 = vld [vmem:[%s2 + $0x7a0] sm:$0xff]
    %v928 = vld [vmem:[%s2 + $0x7a8] sm:$0xff]
    %v929 = vld [vmem:[%s2 + $0x7b0] sm:$0xff]
    %v930 = vld [vmem:[%s2 + $0x7b8] sm:$0xff]
    %v931 = vld [vmem:[%s2 + $0x7c0] sm:$0xff]
    %v932 = vld [vmem:[%s2 + $0x7c8] sm:$0xff]
    %v933 = vld [vmem:[%s2 + $0x7d0] sm:$0xff]
    %v934 = vld [vmem:[%s2 + $0x7d8] sm:$0xff]
    %v935 = vld [vmem:[%s2 + $0x7e0] sm:$0xff]
    %v936 = vld [vmem:[%s2 + $0x7e8] sm:$0xff]
    %v937 = vld [vmem:[%s2 + $0x7f0] sm:$0xff]
    %v938 = vld [vmem:[%s2 + $0x7f8] sm:$0xff]
    %939 = vmatpush.msra.mxu0 %v713
    %940 = vmatpush.msra.mxu0 %v711
    %941 = vmatpush.msra.mxu0 %v709
    %942 = vmatpush.msra.mxu0 %v707
    %943 = vmatpush.msra.mxu0 %v705
    %944 = vmatpush.msra.mxu0 %v703
    %945 = vmatpush.msra.mxu0 %v701
    %946 = vmatpush.msra.mxu0 %v699
    %947 = vmatpush.msra.mxu0 %v697
    %948 = vmatpush.msra.mxu0 %v695
    %949 = vmatpush.msra.mxu0 %v693
    %950 = vmatpush.msra.mxu0 %v691
    %951 = vmatpush.msra.mxu0 %v689
    %952 = vmatpush.msra.mxu0 %v687
    %953 = vmatpush.msra.mxu0 %v685
    %954 = vmatpush.msra.mxu0 %v683
    %955 = vmatmul.f32.gmra.mxu0 %v675
    %v956 = vpop.f32.mrf.mxu0
    %v957 = vadd.f32 0.0, %v956
    %958 = vdwg.mxu0
    %959 = vmatpush.msra.mxu0 %v745
    %960 = vmatpush.msra.mxu0 %v743
    %961 = vmatpush.msra.mxu0 %v741
    %962 = vmatpush.msra.mxu0 %v739
    %963 = vmatpush.msra.mxu0 %v737
    %964 = vmatpush.msra.mxu0 %v735
    %965 = vmatpush.msra.mxu0 %v733
    %966 = vmatpush.msra.mxu0 %v731
    %967 = vmatpush.msra.mxu0 %v729
    %968 = vmatpush.msra.mxu0 %v727
    %969 = vmatpush.msra.mxu0 %v725
    %970 = vmatpush.msra.mxu0 %v723
    %971 = vmatpush.msra.mxu0 %v721
    %972 = vmatpush.msra.mxu0 %v719
    %973 = vmatpush.msra.mxu0 %v717
    %974 = vmatpush.msra.mxu0 %v715
    %975 = vmatmul.f32.gmra.mxu0 %v676
    %v976 = vpop.f32.mrf.mxu0
    %v977 = vadd.f32 %v957, %v976
    %978 = vdwg.mxu0
    %979 = vmatpush.msra.mxu0 %v777
    %980 = vmatpush.msra.mxu0 %v775
    %981 = vmatpush.msra.mxu0 %v773
    %982 = vmatpush.msra.mxu0 %v771
    %983 = vmatpush.msra.mxu0 %v769
    %984 = vmatpush.msra.mxu0 %v767
    %985 = vmatpush.msra.mxu0 %v765
    %986 = vmatpush.msra.mxu0 %v763
    %987 = vmatpush.msra.mxu0 %v761
    %988 = vmatpush.msra.mxu0 %v759
    %989 = vmatpush.msra.mxu0 %v757
    %990 = vmatpush.msra.mxu0 %v755
    %991 = vmatpush.msra.mxu0 %v753
    %992 = vmatpush.msra.mxu0 %v751
    %993 = vmatpush.msra.mxu0 %v749
    %994 = vmatpush.msra.mxu0 %v747
    %995 = vmatmul.f32.gmra.mxu0 %v677
    %v996 = vpop.f32.mrf.mxu0
    %v997 = vadd.f32 %v977, %v996
    %998 = vdwg.mxu0
    %999 = vmatpush.msra.mxu0 %v809
    %1000 = vmatpush.msra.mxu0 %v807
    %1001 = vmatpush.msra.mxu0 %v805
    %1002 = vmatpush.msra.mxu0 %v803
    %1003 = vmatpush.msra.mxu0 %v801
    %1004 = vmatpush.msra.mxu0 %v799
    %1005 = vmatpush.msra.mxu0 %v797
    %1006 = vmatpush.msra.mxu0 %v795
    %1007 = vmatpush.msra.mxu0 %v793
    %1008 = vmatpush.msra.mxu0 %v791
    %1009 = vmatpush.msra.mxu0 %v789
    %1010 = vmatpush.msra.mxu0 %v787
    %1011 = vmatpush.msra.mxu0 %v785
    %1012 = vmatpush.msra.mxu0 %v783
    %1013 = vmatpush.msra.mxu0 %v781
    %1014 = vmatpush.msra.mxu0 %v779
    %1015 = vmatmul.f32.gmra.mxu0 %v678
    %v1016 = vpop.f32.mrf.mxu0
    %v1017 = vadd.f32 %v997, %v1016
    %1018 = vdwg.mxu0
    %1019 = vmatpush.msra.mxu0 %v841
    %1020 = vmatpush.msra.mxu0 %v839
    %1021 = vmatpush.msra.mxu0 %v837
    %1022 = vmatpush.msra.mxu0 %v835
    %1023 = vmatpush.msra.mxu0 %v833
    %1024 = vmatpush.msra.mxu0 %v831
    %1025 = vmatpush.msra.mxu0 %v829
    %1026 = vmatpush.msra.mxu0 %v827
    %1027 = vmatpush.msra.mxu0 %v825
    %1028 = vmatpush.msra.mxu0 %v823
    %1029 = vmatpush.msra.mxu0 %v821
    %1030 = vmatpush.msra.mxu0 %v819
    %1031 = vmatpush.msra.mxu0 %v817
    %1032 = vmatpush.msra.mxu0 %v815
    %1033 = vmatpush.msra.mxu0 %v813
    %1034 = vmatpush.msra.mxu0 %v811
    %1035 = vmatmul.f32.gmra.mxu0 %v679
    %v1036 = vpop.f32.mrf.mxu0
    %v1037 = vadd.f32 %v1017, %v1036
    %1038 = vdwg.mxu0
    %1039 = vmatpush.msra.mxu0 %v873
    %1040 = vmatpush.msra.mxu0 %v871
    %1041 = vmatpush.msra.mxu0 %v869
    %1042 = vmatpush.msra.mxu0 %v867
    %1043 = vmatpush.msra.mxu0 %v865
    %1044 = vmatpush.msra.mxu0 %v863
    %1045 = vmatpush.msra.mxu0 %v861
    %1046 = vmatpush.msra.mxu0 %v859
    %1047 = vmatpush.msra.mxu0 %v857
    %1048 = vmatpush.msra.mxu0 %v855
    %1049 = vmatpush.msra.mxu0 %v853
    %1050 = vmatpush.msra.mxu0 %v851
    %1051 = vmatpush.msra.mxu0 %v849
    %1052 = vmatpush.msra.mxu0 %v847
    %1053 = vmatpush.msra.mxu0 %v845
    %1054 = vmatpush.msra.mxu0 %v843
    %1055 = vmatmul.f32.gmra.mxu0 %v680
    %v1056 = vpop.f32.mrf.mxu0
    %v1057 = vadd.f32 %v1037, %v1056
    %1058 = vdwg.mxu0
    %1059 = vmatpush.msra.mxu0 %v905
    %1060 = vmatpush.msra.mxu0 %v903
    %1061 = vmatpush.msra.mxu0 %v901
    %1062 = vmatpush.msra.mxu0 %v899
    %1063 = vmatpush.msra.mxu0 %v897
    %1064 = vmatpush.msra.mxu0 %v895
    %1065 = vmatpush.msra.mxu0 %v893
    %1066 = vmatpush.msra.mxu0 %v891
    %1067 = vmatpush.msra.mxu0 %v889
    %1068 = vmatpush.msra.mxu0 %v887
    %1069 = vmatpush.msra.mxu0 %v885
    %1070 = vmatpush.msra.mxu0 %v883
    %1071 = vmatpush.msra.mxu0 %v881
    %1072 = vmatpush.msra.mxu0 %v879
    %1073 = vmatpush.msra.mxu0 %v877
    %1074 = vmatpush.msra.mxu0 %v875
    %1075 = vmatmul.f32.gmra.mxu0 %v681
    %v1076 = vpop.f32.mrf.mxu0
    %v1077 = vadd.f32 %v1057, %v1076
    %1078 = vdwg.mxu0
    %1079 = vmatpush.msra.mxu0 %v937
    %1080 = vmatpush.msra.mxu0 %v935
    %1081 = vmatpush.msra.mxu0 %v933
    %1082 = vmatpush.msra.mxu0 %v931
    %1083 = vmatpush.msra.mxu0 %v929
    %1084 = vmatpush.msra.mxu0 %v927
    %1085 = vmatpush.msra.mxu0 %v925
    %1086 = vmatpush.msra.mxu0 %v923
    %1087 = vmatpush.msra.mxu0 %v921
    %1088 = vmatpush.msra.mxu0 %v919
    %1089 = vmatpush.msra.mxu0 %v917
    %1090 = vmatpush.msra.mxu0 %v915
    %1091 = vmatpush.msra.mxu0 %v913
    %1092 = vmatpush.msra.mxu0 %v911
    %1093 = vmatpush.msra.mxu0 %v909
    %1094 = vmatpush.msra.mxu0 %v907
    %1095 = vmatmul.f32.gmra.mxu0 %v682
    %v1096 = vpop.f32.mrf.mxu0
    %v1097 = vadd.f32 %v1077, %v1096
    %1098 = vdwg.mxu0
    %1099 = vmatpush.msra.mxu0 %v714
    %1100 = vmatpush.msra.mxu0 %v712
    %1101 = vmatpush.msra.mxu0 %v710
    %1102 = vmatpush.msra.mxu0 %v708
    %1103 = vmatpush.msra.mxu0 %v706
    %1104 = vmatpush.msra.mxu0 %v704
    %1105 = vmatpush.msra.mxu0 %v702
    %1106 = vmatpush.msra.mxu0 %v700
    %1107 = vmatpush.msra.mxu0 %v698
    %1108 = vmatpush.msra.mxu0 %v696
    %1109 = vmatpush.msra.mxu0 %v694
    %1110 = vmatpush.msra.mxu0 %v692
    %1111 = vmatpush.msra.mxu0 %v690
    %1112 = vmatpush.msra.mxu0 %v688
    %1113 = vmatpush.msra.mxu0 %v686
    %1114 = vmatpush.msra.mxu0 %v684
    %1115 = vmatmul.f32.gmra.mxu0 %v675
    %v1116 = vpop.f32.mrf.mxu0
    %v1117 = vadd.f32 0.0, %v1116
    %1118 = vdwg.mxu0
    %1119 = vmatpush.msra.mxu0 %v746
    %1120 = vmatpush.msra.mxu0 %v744
    %1121 = vmatpush.msra.mxu0 %v742
    %1122 = vmatpush.msra.mxu0 %v740
    %1123 = vmatpush.msra.mxu0 %v738
    %1124 = vmatpush.msra.mxu0 %v736
    %1125 = vmatpush.msra.mxu0 %v734
    %1126 = vmatpush.msra.mxu0 %v732
    %1127 = vmatpush.msra.mxu0 %v730
    %1128 = vmatpush.msra.mxu0 %v728
    %1129 = vmatpush.msra.mxu0 %v726
    %1130 = vmatpush.msra.mxu0 %v724
    %1131 = vmatpush.msra.mxu0 %v722
    %1132 = vmatpush.msra.mxu0 %v720
    %1133 = vmatpush.msra.mxu0 %v718
    %1134 = vmatpush.msra.mxu0 %v716
    %1135 = vmatmul.f32.gmra.mxu0 %v676
    %v1136 = vpop.f32.mrf.mxu0
    %v1137 = vadd.f32 %v1117, %v1136
    %1138 = vdwg.mxu0
    %1139 = vmatpush.msra.mxu0 %v778
    %1140 = vmatpush.msra.mxu0 %v776
    %1141 = vmatpush.msra.mxu0 %v774
    %1142 = vmatpush.msra.mxu0 %v772
    %1143 = vmatpush.msra.mxu0 %v770
    %1144 = vmatpush.msra.mxu0 %v768
    %1145 = vmatpush.msra.mxu0 %v766
    %1146 = vmatpush.msra.mxu0 %v764
    %1147 = vmatpush.msra.mxu0 %v762
    %1148 = vmatpush.msra.mxu0 %v760
    %1149 = vmatpush.msra.mxu0 %v758
    %1150 = vmatpush.msra.mxu0 %v756
    %1151 = vmatpush.msra.mxu0 %v754
    %1152 = vmatpush.msra.mxu0 %v752
    %1153 = vmatpush.msra.mxu0 %v750
    %1154 = vmatpush.msra.mxu0 %v748
    %1155 = vmatmul.f32.gmra.mxu0 %v677
    %v1156 = vpop.f32.mrf.mxu0
    %v1157 = vadd.f32 %v1137, %v1156
    %1158 = vdwg.mxu0
    %1159 = vmatpush.msra.mxu0 %v810
    %1160 = vmatpush.msra.mxu0 %v808
    %1161 = vmatpush.msra.mxu0 %v806
    %1162 = vmatpush.msra.mxu0 %v804
    %1163 = vmatpush.msra.mxu0 %v802
    %1164 = vmatpush.msra.mxu0 %v800
    %1165 = vmatpush.msra.mxu0 %v798
    %1166 = vmatpush.msra.mxu0 %v796
    %1167 = vmatpush.msra.mxu0 %v794
    %1168 = vmatpush.msra.mxu0 %v792
    %1169 = vmatpush.msra.mxu0 %v790
    %1170 = vmatpush.msra.mxu0 %v788
    %1171 = vmatpush.msra.mxu0 %v786
    %1172 = vmatpush.msra.mxu0 %v784
    %1173 = vmatpush.msra.mxu0 %v782
    %1174 = vmatpush.msra.mxu0 %v780
    %1175 = vmatmul.f32.gmra.mxu0 %v678
    %v1176 = vpop.f32.mrf.mxu0
    %v1177 = vadd.f32 %v1157, %v1176
    %1178 = vdwg.mxu0
    %1179 = vmatpush.msra.mxu0 %v842
    %1180 = vmatpush.msra.mxu0 %v840
    %1181 = vmatpush.msra.mxu0 %v838
    %1182 = vmatpush.msra.mxu0 %v836
    %1183 = vmatpush.msra.mxu0 %v834
    %1184 = vmatpush.msra.mxu0 %v832
    %1185 = vmatpush.msra.mxu0 %v830
    %1186 = vmatpush.msra.mxu0 %v828
    %1187 = vmatpush.msra.mxu0 %v826
    %1188 = vmatpush.msra.mxu0 %v824
    %1189 = vmatpush.msra.mxu0 %v822
    %1190 = vmatpush.msra.mxu0 %v820
    %1191 = vmatpush.msra.mxu0 %v818
    %1192 = vmatpush.msra.mxu0 %v816
    %1193 = vmatpush.msra.mxu0 %v814
    %1194 = vmatpush.msra.mxu0 %v812
    %1195 = vmatmul.f32.gmra.mxu0 %v679
    %v1196 = vpop.f32.mrf.mxu0
    %v1197 = vadd.f32 %v1177, %v1196
    %1198 = vdwg.mxu0
    %1199 = vmatpush.msra.mxu0 %v874
    %1200 = vmatpush.msra.mxu0 %v872
    %1201 = vmatpush.msra.mxu0 %v870
    %1202 = vmatpush.msra.mxu0 %v868
    %1203 = vmatpush.msra.mxu0 %v866
    %1204 = vmatpush.msra.mxu0 %v864
    %1205 = vmatpush.msra.mxu0 %v862
    %1206 = vmatpush.msra.mxu0 %v860
    %1207 = vmatpush.msra.mxu0 %v858
    %1208 = vmatpush.msra.mxu0 %v856
    %1209 = vmatpush.msra.mxu0 %v854
    %1210 = vmatpush.msra.mxu0 %v852
    %1211 = vmatpush.msra.mxu0 %v850
    %1212 = vmatpush.msra.mxu0 %v848
    %1213 = vmatpush.msra.mxu0 %v846
    %1214 = vmatpush.msra.mxu0 %v844
    %1215 = vmatmul.f32.gmra.mxu0 %v680
    %v1216 = vpop.f32.mrf.mxu0
    %v1217 = vadd.f32 %v1197, %v1216
    %1218 = vdwg.mxu0
    %1219 = vmatpush.msra.mxu0 %v906
    %1220 = vmatpush.msra.mxu0 %v904
    %1221 = vmatpush.msra.mxu0 %v902
    %1222 = vmatpush.msra.mxu0 %v900
    %1223 = vmatpush.msra.mxu0 %v898
    %1224 = vmatpush.msra.mxu0 %v896
    %1225 = vmatpush.msra.mxu0 %v894
    %1226 = vmatpush.msra.mxu0 %v892
    %1227 = vmatpush.msra.mxu0 %v890
    %1228 = vmatpush.msra.mxu0 %v888
    %1229 = vmatpush.msra.mxu0 %v886
    %1230 = vmatpush.msra.mxu0 %v884
    %1231 = vmatpush.msra.mxu0 %v882
    %1232 = vmatpush.msra.mxu0 %v880
    %1233 = vmatpush.msra.mxu0 %v878
    %1234 = vmatpush.msra.mxu0 %v876
    %1235 = vmatmul.f32.gmra.mxu0 %v681
    %v1236 = vpop.f32.mrf.mxu0
    %v1237 = vadd.f32 %v1217, %v1236
    %1238 = vdwg.mxu0
    %1239 = vmatpush.msra.mxu0 %v938
    %1240 = vmatpush.msra.mxu0 %v936
    %1241 = vmatpush.msra.mxu0 %v934
    %1242 = vmatpush.msra.mxu0 %v932
    %1243 = vmatpush.msra.mxu0 %v930
    %1244 = vmatpush.msra.mxu0 %v928
    %1245 = vmatpush.msra.mxu0 %v926
    %1246 = vmatpush.msra.mxu0 %v924
    %1247 = vmatpush.msra.mxu0 %v922
    %1248 = vmatpush.msra.mxu0 %v920
    %1249 = vmatpush.msra.mxu0 %v918
    %1250 = vmatpush.msra.mxu0 %v916
    %1251 = vmatpush.msra.mxu0 %v914
    %1252 = vmatpush.msra.mxu0 %v912
    %1253 = vmatpush.msra.mxu0 %v910
    %1254 = vmatpush.msra.mxu0 %v908
    %1255 = vmatmul.f32.gmra.mxu0 %v682
    %v1256 = vpop.f32.mrf.mxu0
    %v1257 = vadd.f32 %v1237, %v1256
    %1258 = vdwg.mxu0
    %v1259 = vxor.u32 %v1097, 2147483648
    %v1260 = vxor.u32 %v1257, 2147483648
    %v1261 = vmul.f32 %v1259, 1.442695
    %v1262 = vpow.pop %v1261
    %v1263 = vmul.f32 %v1260, 1.442695
    %v1264 = vpow.pop %v1263
    %v1265 = vadd.f32 %v1262, 1.0
    %v1266 = vadd.f32 %v1264, 1.0
    %v1267 = vrcp.pop %v1265
    %v1268 = vmul.f32 %v1265, %v1267
    %v1269 = vsub.f32 1.0, %v1268
    %v1270 = vmul.f32 %v1267, %v1269
    %v1271 = vadd.f32 %v1267, %v1270
    %vm1272 = vweird.f32 %v1265
    %vm1273 = vweird.f32 %v1267
    %vm1274 = vmor %vm1272, %vm1273
    %v1275 = vsel %vm1274, %v1267, %v1271
    %v1276 = vand.u32 2147483647, %v1265
    %vm1277 = vcmp.eq.f32.partialorder %v1276, 8.507059e+37
    %v1278 = vand.u32 %v1265, 2147483648
    %v1279 = vor.u32 1.1754944e-38, %v1278
    %v1280 = vsel %vm1277, %v1279, %v1275
    %v1281 = vmul.f32 1.0, %v1280
    %v1282 = vrcp.pop %v1266
    %v1283 = vmul.f32 %v1266, %v1282
    %v1284 = vsub.f32 1.0, %v1283
    %v1285 = vmul.f32 %v1282, %v1284
    %v1286 = vadd.f32 %v1282, %v1285
    %vm1287 = vweird.f32 %v1266
    %vm1288 = vweird.f32 %v1282
    %vm1289 = vmor %vm1287, %vm1288
    %v1290 = vsel %vm1289, %v1282, %v1286
    %v1291 = vand.u32 2147483647, %v1266
    %vm1292 = vcmp.eq.f32.partialorder %v1291, 8.507059e+37
    %v1293 = vand.u32 %v1266, 2147483648
    %v1294 = vor.u32 1.1754944e-38, %v1293
    %v1295 = vsel %vm1292, %v1294, %v1290
    %v1296 = vmul.f32 1.0, %v1295
    %v1299 = vrot.slane %v1296, 6
    %v1300 = vsel %vm70, %v1281, %v1299
    %1302 = vst [vmem:[%s3] sm:$0xf] %v1300
  $region21: #{spatial_attention.1} parent=0 // pred_fallthru
    _
  // Predicated region
  $region22: #{spatial_attention.1} parent=0 // pred_check
    _
  $region23: #{spatial_attention.1} parent=0 // pred_check_branch
    %1304 = sbr.rel (0) target = $region25
  $region24: #{spatial_attention.1} parent=0 // pred_region
    _
  $region25: #{spatial_attention.1} parent=0 // pred_fallthru
    _
  // Predicated region
  $region26: #{spatial_attention.1} parent=0 // pred_check
    _
  $region27: #{spatial_attention.1} parent=0 // pred_check_branch
    %1306 = sbr.rel (0) target = $region29
  $region28: #{spatial_attention.1} parent=0 // pred_region
    _
  $region29: #{spatial_attention.1} parent=0 // pred_fallthru
    _

</llo_original>
